<compile_context>
chip_gen: v7x
topology: tpu7x:2x2x1
jax: 0.10.0
libtpu: 0.0.40
codegen_flags: <defaults>
</compile_context>

<pallas_src>
import functools

import jax
import jax.numpy as jnp
from jax.experimental import pallas as pl
from jax.experimental.pallas import tpu as pltpu


def _cdiv(a, b):
    return -(-a // b)


def _ctx_conv1d_kernel(xc_ref, xh_ref, w_ref, ctx_ref, o_ref, *, n_shift, tl):
    # xc_ref : (1, P, TL)     current phase-compacted input tile (P = pad8(stride*C_in))
    # xh_ref : (1, P, 128)    halo: next 128 columns (covers shifts 1..n_shift-1)
    # w_ref  : (C_out, K)     fused weights, K = n_shift * P (all taps in one matmul)
    # ctx_ref: (1, C_out, 1)  hoisted per-sample bias + context column
    # o_ref  : (1, C_out, TL) output tile, NCL layout (lane-dense along L)
    xc = xc_ref[0]
    if n_shift > 1:
        # One aligned lane concat for the halo, then the K-row stacked MXU operand is
        # built from n_shift shifted views (aligned sublane concat since P % 8 == 0).
        # TODO(synk): per-shift pltpu.roll (XLU) instead of unaligned lane slices would
        # move the shifts off the VPU/load-store path entirely.
        window = jnp.concatenate([xc, xh_ref[0]], axis=-1)            # (P, TL + 128)
        parts = [xc] + [window[:, d:d + tl] for d in range(1, n_shift)]
        stacked = jnp.concatenate(parts, axis=0)                      # (K, TL)
    else:
        stacked = xc                                                  # s >= k: plain matmul
    acc = jnp.dot(w_ref[...], stacked, preferred_element_type=jnp.float32)  # (C_out, TL)
    o_ref[0] = (acc + ctx_ref[0]).astype(o_ref.dtype)                 # ctx broadcast over lanes


def contextual_conv1d(x, weight, bias, c, c_weight, *, kernel_size, stride=1,
                      padding=0, dilation=1, groups=1, compute_dtype=None):
    """Pallas implementation of ContextualConv1d.forward.

    x:        (N, C_in, L)
    weight:   (C_out, C_in // groups, kernel_size)
    bias:     (C_out,) or None
    c:        (N, c_dim) or None
    c_weight: (C_out, c_dim) or None
    returns:  (N, C_out, L_out) in x.dtype
    """
    del dilation  # TODO(synk): PyTorch forward ignores dilation (tensor.unfold has none).
    N, C_in, L = x.shape
    C_out = weight.shape[0]
    k, s, p, G = int(kernel_size), int(stride), int(padding), int(groups)
    assert C_in % G == 0 and C_out % G == 0
    gin, gout = C_in // G, C_out // G

    L_out = (L + 2 * p - k) // s + 1
    assert L_out > 0

    n_shift = (k - 1) // s + 1            # distinct lane shifts after phase compaction
    assert n_shift - 1 <= 128, "128-lane halo covers (kernel_size-1)//stride <= 128"

    def _p8(a):
        return _cdiv(a, 8) * 8

    def _p128(a):
        return _cdiv(a, 128) * 128

    P = s * C_in                          # phase-major channel rows per lane position
    P_pad = _p8(P)                        # pad to 8 sublanes -> aligned operand assembly
    K = n_shift * P_pad                   # contraction size of the fused matmul

    cdtype = jnp.dtype(compute_dtype) if compute_dtype is not None else jnp.dtype(x.dtype)
    esz = cdtype.itemsize
    osz = jnp.dtype(x.dtype).itemsize

    # ---- generation-aware tiling / VMEM policy (v5e/v6e: 128 MiB VMEM, v7x: 64 MiB) ----
    try:
        vmem_cap = int(getattr(pltpu.get_tpu_info(), "vmem_capacity_bytes", 64 << 20))
    except Exception:  # conservative fallback
        vmem_cap = 64 << 20
    big_vmem = vmem_cap > (96 << 20)
    tl_cap = 2048 if big_vmem else 512
    tile_budget = (20 << 20) if big_vmem else (6 << 20)
    vmem_ceiling = (96 << 20) if big_vmem else (48 << 20)

    # Per-lane bytes of the per-step working set (x tile + stacked operand + acc + out).
    per_lane = (P_pad + n_shift * P_pad) * esz + _p8(C_out) * (4 + osz)
    TL = min(tl_cap, 128 * _cdiv(L_out, 128))
    while TL > 128 and per_lane * TL > tile_budget:
        TL -= 128
    n_lt = _cdiv(L_out, TL)
    L_out_pad = n_lt * TL
    L_ph_pad = (n_lt + 1) * TL            # +1 tile so the 128-lane halo block always exists
    L_total = L_ph_pad * s

    # ---- conv padding + right zero-pad, then phase-compact for stride > 1 --------------
    right = L_total - L - p
    assert right >= 0
    x_pad = jnp.pad(x, ((0, 0), (0, 0), (p, right))).astype(cdtype)
    if s == 1:
        x_ph = x_pad                                                   # (N, C_in, L_ph_pad)
    else:
        # x_ph[n, r*C_in + ci, q] = x_pad[n, ci, q*s + r]
        x_ph = x_pad.reshape(N, C_in, L_ph_pad, s)
        x_ph = jnp.transpose(x_ph, (0, 3, 1, 2)).reshape(N, P, L_ph_pad)
    if P_pad != P:
        x_ph = jnp.pad(x_ph, ((0, 0), (0, P_pad - P), (0, 0)))

    # ---- hoisted per-sample bias + context column: ctx[n,o] = bias[o] + c[n]·c_weight[o]
    if c is not None and c_weight is not None:
        ctx = jnp.dot(c.astype(jnp.float32), c_weight.astype(jnp.float32).T)   # (N, C_out)
    else:
        ctx = jnp.zeros((N, C_out), jnp.float32)
    if bias is not None:
        ctx = ctx + bias.astype(jnp.float32)[None, :]
    ctx = ctx.reshape(N, C_out, 1)

    # ---- fused weights: column (d*P_pad + r*C_in + ci) holds tap j = d*s + r -----------
    # Groups fused block-diagonally (the zero FLOPs ride on MXU slack at small G).
    # TODO(synk): for depthwise-like large `groups`, add a grid axis over G instead.
    w_g = jnp.transpose(weight.reshape(G, gout, gin, k), (3, 0, 1, 2))   # (k, G, gout, gin)
    w_tap = jnp.zeros((k, C_out, C_in), weight.dtype)
    for g in range(G):
        w_tap = w_tap.at[:, g * gout:(g + 1) * gout, g * gin:(g + 1) * gin].set(w_g[:, g])
    w_tap = jnp.zeros((n_shift * s, C_out, C_in), weight.dtype).at[:k].set(w_tap)
    w3 = jnp.transpose(w_tap.reshape(n_shift, s, C_out, C_in),
                       (2, 0, 1, 3)).reshape(C_out, n_shift, P)
    if P_pad != P:
        w3 = jnp.pad(w3, ((0, 0), (0, 0), (0, P_pad - P)))
    W2 = w3.reshape(C_out, K).astype(cdtype)

    # ---- VMEM limit: double-buffered blocks + in-kernel operand/acc, with margin -------
    vmem_need = (2 * P_pad * TL * esz                 # x tile (double-buffered)
                 + 2 * P_pad * 128 * esz              # halo
                 + 2 * _p8(C_out) * _p128(K) * esz    # fused weights (resident)
                 + 2 * _p8(C_out) * 128 * 4           # ctx column
                 + 2 * _p8(C_out) * TL * osz          # output tile
                 + (n_shift + 1) * P_pad * TL * esz   # window + stacked operand
                 + _p8(C_out) * TL * 4)               # f32 accumulator
    vmem_limit = int(min(max(2 * vmem_need, 32 << 20), vmem_ceiling))

    kern = functools.partial(_ctx_conv1d_kernel, n_shift=n_shift, tl=TL)
    tl_blocks = TL // 128

    out = pl.pallas_call(
        kern,
        out_shape=jax.ShapeDtypeStruct((N, C_out, L_out_pad), x.dtype),
        grid_spec=pltpu.PrefetchScalarGridSpec(
            num_scalar_prefetch=0,
            grid=(N, n_lt),                           # independent axes -> megacore-shardable
            in_specs=[
                # current phase-compacted input tile
                pl.BlockSpec((1, P_pad, TL), lambda n, lt: (n, 0, lt)),
                # 128-lane halo: next columns of the same array
                pl.BlockSpec((1, P_pad, 128), lambda n, lt: (n, 0, (lt + 1) * tl_blocks)),
                # fused weights, constant index_map -> resident across the grid
                # TODO(synk): pipeline_mode=pl.Buffered(1) would halve its VMEM on v7x.
                pl.BlockSpec((C_out, K), lambda n, lt: (0, 0)),
                # hoisted per-sample bias + context column
                pl.BlockSpec((1, C_out, 1), lambda n, lt: (n, 0, 0)),
            ],
            out_specs=pl.BlockSpec((1, C_out, TL), lambda n, lt: (n, 0, lt)),
        ),
        compiler_params=pltpu.CompilerParams(
            dimension_semantics=("parallel", "parallel"),
            vmem_limit_bytes=vmem_limit,
        ),
    )(x_ph, x_ph, W2, ctx)

    return out[:, :, :L_out]


def _reference(x, weight, bias, c, c_weight, *, kernel_size, stride, padding, groups):
    """Pure-JAX reference mirroring the PyTorch forward exactly."""
    N, C_in, L = x.shape
    k, s, p, G = kernel_size, stride, padding, groups
    gin, gout = C_in // G, weight.shape[0] // G
    x_padded = jnp.pad(x, ((0, 0), (0, 0), (p, p)))
    L_out = (L + 2 * p - k) // s + 1
    idx = jnp.arange(L_out)[:, None] * s + jnp.arange(k)[None, :]
    patches = x_padded[:, :, idx]
    unfolded = jnp.transpose(patches, (0, 2, 1, 3)).reshape(N, L_out, C_in * k)
    outs = []
    for g in range(G):
        w_g = weight[g * gout:(g + 1) * gout].reshape(gout, -1)
        inp_g = unfolded[:, :, g * gin * k:(g + 1) * gin * k]
        if c is not None:
            c_exp = jnp.broadcast_to(c[:, None, :], (N, L_out, c.shape[-1]))
            w_g = jnp.concatenate([w_g, c_weight[g * gout:(g + 1) * gout]], axis=1)
            inp_g = jnp.concatenate([inp_g, c_exp], axis=-1)
        outs.append(jnp.matmul(inp_g, w_g.T))
    out = jnp.concatenate(outs, axis=-1)
    if bias is not None:
        out = out + bias[None, None, :]
    return jnp.transpose(out, (0, 2, 1))


if __name__ == "__main__":
    # Test 1: module config in=4, out=8, k=3, stride=1, pad=1, groups=2, c_dim=5.
    N, C_in, L = 2, 4, 16
    C_out, k, stride, padding, groups, c_dim = 8, 3, 1, 1, 2, 5
    kx, kc, kw, kb, kcw = jax.random.split(jax.random.PRNGKey(0), 5)
    x = jax.random.normal(kx, (N, C_in, L), dtype=jnp.float32)
    c = jax.random.normal(kc, (N, c_dim), dtype=jnp.float32)
    weight = jax.random.normal(kw, (C_out, C_in // groups, k), dtype=jnp.float32)
    bias = jax.random.normal(kb, (C_out,), dtype=jnp.float32)
    c_weight = jax.random.normal(kcw, (C_out, c_dim), dtype=jnp.float32)

    fn = jax.jit(functools.partial(contextual_conv1d, kernel_size=k, stride=stride,
                                   padding=padding, dilation=1, groups=groups))
    out = jax.block_until_ready(fn(x, weight, bias, c, c_weight))
    ref = _reference(x, weight, bias, c, c_weight,
                     kernel_size=k, stride=stride, padding=padding, groups=groups)
    L_out = (L + 2 * padding - k) // stride + 1
    assert out.shape == (N, C_out, L_out), out.shape
    assert jnp.allclose(out, ref, atol=1e-4, rtol=1e-4), float(jnp.max(jnp.abs(out - ref)))

    # Test 2: stride=2, groups=1, no context -> exercises the phase-split path.
    N2, C_in2, L2, C_out2, k2, s2, p2 = 2, 4, 16, 6, 3, 2, 1
    kx2, kw2, kb2 = jax.random.split(jax.random.PRNGKey(1), 3)
    x2 = jax.random.normal(kx2, (N2, C_in2, L2), dtype=jnp.float32)
    w2 = jax.random.normal(kw2, (C_out2, C_in2, k2), dtype=jnp.float32)
    b2 = jax.random.normal(kb2, (C_out2,), dtype=jnp.float32)
    fn2 = jax.jit(functools.partial(contextual_conv1d, kernel_size=k2, stride=s2,
                                    padding=p2, dilation=1, groups=1))
    out2 = jax.block_until_ready(fn2(x2, w2, b2, None, None))
    ref2 = _reference(x2, w2, b2, None, None,
                      kernel_size=k2, stride=s2, padding=p2, groups=1)
    L_out2 = (L2 + 2 * p2 - k2) // s2 + 1
    assert out2.shape == (N2, C_out2, L_out2), out2.shape
    assert jnp.allclose(out2, ref2, atol=1e-4, rtol=1e-4), float(jnp.max(jnp.abs(out2 - ref2)))

    print("KERNEL_OK")
</pallas_src>

<mosaic_0001>
module attributes {stable_mosaic.version = 11 : i64} {
  func.func @_ctx_conv1d_kernel(%arg0: i32, %arg1: i32, %arg2: memref<1x8x128xf32, #tpu.memory_space<vmem>>, %arg3: memref<1x8x128xf32, #tpu.memory_space<vmem>>, %arg4: memref<8x24xf32, #tpu.memory_space<vmem>>, %arg5: memref<1x8x1xf32, #tpu.memory_space<vmem>>, %arg6: memref<1x8x128xf32, #tpu.memory_space<vmem>>) attributes {dimension_semantics = [#tpu.dimension_semantics<parallel>, #tpu.dimension_semantics<parallel>], iteration_bounds = array<i64: 2, 1>, scalar_prefetch = 0 : i64, scratch_operands = 0 : i64, tpu.core_type = #tpu.core_type<tc>, window_params = [{transform_indices = @transform_0, window_bounds = array<i64: 1, 8, 128>}, {transform_indices = @transform_1, window_bounds = array<i64: 1, 8, 128>}, {pipeline_mode = #tpu.pipeline_mode<synchronous>, transform_indices = @transform_2, window_bounds = array<i64: 8, 24>}, {transform_indices = @transform_3, window_bounds = array<i64: 1, 8, 1>}, {transform_indices = @transform_4, window_bounds = array<i64: 1, 8, 128>}]} {
    %c0 = arith.constant 0 : index
    %c0_0 = arith.constant 0 : index
    %c0_1 = arith.constant 0 : index
    %0 = vector.load %arg2[%c0, %c0_0, %c0_1] : memref<1x8x128xf32, #tpu.memory_space<vmem>>, vector<1x8x128xf32>
    %1 = vector.shape_cast %0 : vector<1x8x128xf32> to vector<8x128xf32>
    %c0_2 = arith.constant 0 : index
    %c0_3 = arith.constant 0 : index
    %c0_4 = arith.constant 0 : index
    %2 = vector.load %arg3[%c0_2, %c0_3, %c0_4] : memref<1x8x128xf32, #tpu.memory_space<vmem>>, vector<1x8x128xf32>
    %3 = vector.shape_cast %2 : vector<1x8x128xf32> to vector<8x128xf32>
    %4 = tpu.concatenate %1, %3 in 1 : vector<8x128xf32>, vector<8x128xf32> -> vector<8x256xf32>
    %5 = vector.extract_strided_slice %4 {offsets = [0, 1], sizes = [8, 128], strides = [1, 1]} : vector<8x256xf32> to vector<8x128xf32>
    %6 = vector.extract_strided_slice %4 {offsets = [0, 2], sizes = [8, 128], strides = [1, 1]} : vector<8x256xf32> to vector<8x128xf32>
    %7 = tpu.concatenate %1, %5, %6 in 0 : vector<8x128xf32>, vector<8x128xf32>, vector<8x128xf32> -> vector<24x128xf32>
    %c0_5 = arith.constant 0 : index
    %c0_6 = arith.constant 0 : index
    %8 = vector.load %arg4[%c0_5, %c0_6] : memref<8x24xf32, #tpu.memory_space<vmem>>, vector<8x24xf32>
    %cst = arith.constant dense<0.000000e+00> : vector<8x128xf32>
    %9 = tpu.matmul %8, %7, %cst {dimension_numbers = #tpu.dot_dimension_numbers<[1], [0], [0], [1], [0, 0, 1, 1], [], []>} : vector<8x24xf32>, vector<24x128xf32>, vector<8x128xf32> -> vector<8x128xf32>
    %c0_7 = arith.constant 0 : index
    %c0_8 = arith.constant 0 : index
    %c0_9 = arith.constant 0 : index
    %10 = vector.load %arg5[%c0_7, %c0_8, %c0_9] : memref<1x8x1xf32, #tpu.memory_space<vmem>>, vector<1x8x1xf32>
    %11 = vector.shape_cast %10 : vector<1x8x1xf32> to vector<8x1xf32>
    %12 = vector.broadcast %11 : vector<8x1xf32> to vector<8x128xf32>
    %13 = arith.addf %9, %12 : vector<8x128xf32>
    %c0_10 = arith.constant 0 : index
    %c0_11 = arith.constant 0 : index
    %c0_12 = arith.constant 0 : index
    %14 = vector.load %arg6[%c0_10, %c0_11, %c0_12] : memref<1x8x128xf32, #tpu.memory_space<vmem>>, vector<1x8x128xf32>
    %15 = vector.shape_cast %14 : vector<1x8x128xf32> to vector<8x128xf32>
    %16 = vector.shape_cast %13 : vector<8x128xf32> to vector<1x8x128xf32>
    tpu.vector_store %arg6[%c0_10, %c0_11, %c0_12], %16 {strides = array<i32>} : memref<1x8x128xf32, #tpu.memory_space<vmem>>, vector<1x8x128xf32>,
    return
  }
  func.func @transform_0(%arg0: i32, %arg1: i32) -> (i32, i32, i32) {
    %c0_i32 = arith.constant 0 : i32
    %c0_i32_0 = arith.constant 0 : i32
    return %arg0, %c0_i32, %arg1 : i32, i32, i32
  }
  func.func @transform_1(%arg0: i32, %arg1: i32) -> (i32, i32, i32) {
    %c1_i32 = arith.constant 1 : i32
    %0 = arith.addi %arg1, %c1_i32 : i32
    %c1_i32_0 = arith.constant 1 : i32
    %1 = arith.muli %0, %c1_i32_0 : i32
    %c0_i32 = arith.constant 0 : i32
    %c0_i32_1 = arith.constant 0 : i32
    return %arg0, %c0_i32, %1 : i32, i32, i32
  }
  func.func @transform_2(%arg0: i32, %arg1: i32) -> (i32, i32) {
    %c0_i32 = arith.constant 0 : i32
    %c0_i32_0 = arith.constant 0 : i32
    %c0_i32_1 = arith.constant 0 : i32
    return %c0_i32, %c0_i32_0 : i32, i32
  }
  func.func @transform_3(%arg0: i32, %arg1: i32) -> (i32, i32, i32) {
    %c0_i32 = arith.constant 0 : i32
    %c0_i32_0 = arith.constant 0 : i32
    %c0_i32_1 = arith.constant 0 : i32
    return %arg0, %c0_i32, %c0_i32_0 : i32, i32, i32
  }
  func.func @transform_4(%arg0: i32, %arg1: i32) -> (i32, i32, i32) {
    %c0_i32 = arith.constant 0 : i32
    %c0_i32_0 = arith.constant 0 : i32
    return %arg0, %c0_i32, %arg1 : i32, i32, i32
  }
}

</mosaic_0001>

<llo_original>
// kernel: contextual_conv1d.1
$region0: #{contextual_conv1d.1}
  #allocation0 [shape = 'u32[]', space=smem, size = 0x4, offset = 0x4, fixed_abs, tag = 'smem constant byte address 0x4 - core index']
  #allocation1 [shape = 'u32[144,128]{1,0:T(1,128)}', space=vmem, size = 0x12000, scoped, tag = 'internal scratch']
  %s0 = inlined_call_operand.vmem [shape: f32[2,8,256], index: 0, kind: input, shape index: {}, may-alias: {0,1}]
  %s1 = inlined_call_operand.vmem [shape: f32[2,8,256], index: 1, kind: input, shape index: {}, may-alias: {0,1}]
  %s2 = inlined_call_operand.vmem [shape: f32[8,24], index: 2, kind: input, shape index: {}]
  %s3 = inlined_call_operand.vmem [shape: f32[2,8,1], index: 3, kind: input, shape index: {}]
  %s4 = inlined_call_operand.hbm [shape: f32[2,8,128], index: 4, kind: output, shape index: {}]
  %s5 = sld [smem:[#allocation0]]
  $region49: #{contextual_conv1d.1} parent=0
    _
  %s7 = ssub.s32 1, %s5
  %s8 = scalar_select 0, %s7, %s5
  $region1: #{contextual_conv1d.1} parent=0
    #allocation2 [shape = 'u8[8192]{0}', space=vmem, size = 0x2000, scoped, tag = 'output window, operand 0']
    #allocation3 [shape = 's32[2]{0}', space=sflag, size = 0x8, scoped, tag = 'scoped memory for contextual_conv1d.1']
    %9 = vsyncpa [#allocation3], 0
    %s10 = scalar_lea.sflag [#allocation3], 1
    %11 = vsyncpa %s10, 0
    loop: start=0, step=1, limit=4
    $region2: #{contextual_conv1d.1} parent=1 // loop_pre_header
      _
    $region3: #{contextual_conv1d.1} parent=1 // loop_header
      %s13 = sphi 0, %s17
      %p14 = scmp.ge.s32.totalorder %s13, 4
      %s20 = sphi 0, %s32
      %s21 = sphi 0, %s28
      %s22 = sphi 0, %s20
      %s23 = sphi 0, %s21
      %s24 = sphi 0, %s22
      %s25 = sphi 0, %s23
      %s37 = sphi 0, %s39
      %s40 = sphi 0, %s37
      %s41 = sphi 0, %s40
      %s57 = sphi 0, %s41
      %s67 = sphi 0, %s69
      %s70 = sphi 0, %s67
      %s71 = sphi 0, %s70
      %s87 = sphi 0, %s71
      %s91 = sphi 0, %s91
      %s93 = sphi 0, %s91
      %s94 = sphi 0, %s93
      %s108 = sphi 0, %s94
      %s114 = sphi 0, %s116
      %s117 = sphi 0, %s114
      %s118 = sphi 0, %s117
      %s134 = sphi 0, %s118
      %s142 = sphi 0, %s144
      %s145 = sphi 0, %s142
      %s146 = sphi 0, %s145
      %s162 = sphi 0, %s146
    $region4: #{contextual_conv1d.1} parent=1 // loop_header_branch
      %16 = sbr.rel (%p14) target = $region8
    $region5: #{contextual_conv1d.1} parent=1 // loop_body
      %s18 = ssub.s32 %s13, 1
      %s19 = ssub.s32 %s13, 2
      %s26 = sadd.s32 1, %s21
      %p27 = scmp.ge.s32.totalorder %s26, 1
      %s28 = scalar_select %p27, 0, %s26
      %s29 = sadd.s32 1, %s20
      %s30 = scalar_select %p27, %s29, %s20
      %p31 = scmp.ge.s32.totalorder %s30, 2
      %s32 = scalar_select %p31, 0, %s30
      %s33 = ssub.s32 %s20, %s32
      %s34 = ssub.s32 %s21, %s28
      %s35 = sor.u32 %s33, %s34
      %p36 = scmp.eq.s32.totalorder %s35, 0
      %s38 = sadd.s32 %s37, 1
      %s39 = scalar_select %p36, %s37, %s38
      %p42 = pneg %p36
      %p43 = scmp.eq.s32.totalorder %s13, 1
      %p44 = por %p42, %p43
      %p45 = scmp.ne.s32.totalorder %s37, %s40
      %p46 = scmp.eq.s32.totalorder %s13, 0
      %p47 = por %p45, %p46
      %p48 = scmp.ne.s32.totalorder %s37, %s40
      %p49 = scmp.eq.s32.totalorder %s18, 1
      %p50 = por %p48, %p49
      %p51 = scmp.ne.s32.totalorder %s40, %s41
      %p52 = scmp.eq.s32.totalorder %s18, 0
      %p53 = por %p51, %p52
      %p54 = scmp.ne.s32.totalorder %s40, %s41
      %p55 = scmp.eq.s32.totalorder %s19, 1
      %p56 = por %p54, %p55
      %p58 = scmp.ne.s32.totalorder %s41, %s57
      %p59 = scmp.eq.s32.totalorder %s19, 0
      %p60 = por %p58, %p59
      %s61 = sadd.s32 %s21, 1
      %s62 = sadd.s32 %s28, 1
      %s63 = ssub.s32 %s20, %s32
      %s64 = ssub.s32 %s61, %s62
      %s65 = sor.u32 %s63, %s64
      %p66 = scmp.eq.s32.totalorder %s65, 0
      %s68 = sadd.s32 %s67, 1
      %s69 = scalar_select %p66, %s67, %s68
      %p72 = pneg %p66
      %p73 = scmp.eq.s32.totalorder %s13, 1
      %p74 = por %p72, %p73
      %p75 = scmp.ne.s32.totalorder %s67, %s70
      %p76 = scmp.eq.s32.totalorder %s13, 0
      %p77 = por %p75, %p76
      %p78 = scmp.ne.s32.totalorder %s67, %s70
      %p79 = scmp.eq.s32.totalorder %s18, 1
      %p80 = por %p78, %p79
      %p81 = scmp.ne.s32.totalorder %s70, %s71
      %p82 = scmp.eq.s32.totalorder %s18, 0
      %p83 = por %p81, %p82
      %p84 = scmp.ne.s32.totalorder %s70, %s71
      %p85 = scmp.eq.s32.totalorder %s19, 1
      %p86 = por %p84, %p85
      %p88 = scmp.ne.s32.totalorder %s71, %s87
      %p89 = scmp.eq.s32.totalorder %s19, 0
      %p90 = por %p88, %p89
      %s92 = sadd.s32 %s91, 1
      %p95 = scmp.eq.s32.totalorder %s13, 1
      %p96 = scmp.ne.s32.totalorder %s91, %s93
      %p97 = scmp.eq.s32.totalorder %s13, 0
      %p98 = por %p96, %p97
      %p99 = scmp.ne.s32.totalorder %s91, %s93
      %p100 = scmp.eq.s32.totalorder %s18, 1
      %p101 = por %p99, %p100
      %p102 = scmp.ne.s32.totalorder %s93, %s94
      %p103 = scmp.eq.s32.totalorder %s18, 0
      %p104 = por %p102, %p103
      %p105 = scmp.ne.s32.totalorder %s93, %s94
      %p106 = scmp.eq.s32.totalorder %s19, 1
      %p107 = por %p105, %p106
      %p109 = scmp.ne.s32.totalorder %s94, %s108
      %p110 = scmp.eq.s32.totalorder %s19, 0
      %p111 = por %p109, %p110
      %s112 = ssub.s32 %s20, %s32
      %p113 = scmp.eq.s32.totalorder %s112, 0
      %s115 = sadd.s32 %s114, 1
      %s116 = scalar_select %p113, %s114, %s115
      %p119 = pneg %p113
      %p120 = scmp.eq.s32.totalorder %s13, 1
      %p121 = por %p119, %p120
      %p122 = scmp.ne.s32.totalorder %s114, %s117
      %p123 = scmp.eq.s32.totalorder %s13, 0
      %p124 = por %p122, %p123
      %p125 = scmp.ne.s32.totalorder %s114, %s117
      %p126 = scmp.eq.s32.totalorder %s18, 1
      %p127 = por %p125, %p126
      %p128 = scmp.ne.s32.totalorder %s117, %s118
      %p129 = scmp.eq.s32.totalorder %s18, 0
      %p130 = por %p128, %p129
      %p131 = scmp.ne.s32.totalorder %s117, %s118
      %p132 = scmp.eq.s32.totalorder %s19, 1
      %p133 = por %p131, %p132
      %p135 = scmp.ne.s32.totalorder %s118, %s134
      %p136 = scmp.eq.s32.totalorder %s19, 0
      %p137 = por %p135, %p136
      %s138 = ssub.s32 %s20, %s32
      %s139 = ssub.s32 %s21, %s28
      %s140 = sor.u32 %s138, %s139
      %p141 = scmp.eq.s32.totalorder %s140, 0
      %s143 = sadd.s32 %s142, 1
      %s144 = scalar_select %p141, %s142, %s143
      %p147 = pneg %p141
      %p148 = scmp.eq.s32.totalorder %s13, 1
      %p149 = por %p147, %p148
      %p150 = scmp.ne.s32.totalorder %s142, %s145
      %p151 = scmp.eq.s32.totalorder %s13, 0
      %p152 = por %p150, %p151
      %p153 = scmp.ne.s32.totalorder %s142, %s145
      %p154 = scmp.eq.s32.totalorder %s18, 1
      %p155 = por %p153, %p154
      %p156 = scmp.ne.s32.totalorder %s145, %s146
      %p157 = scmp.eq.s32.totalorder %s18, 0
      %p158 = por %p156, %p157
      %p159 = scmp.ne.s32.totalorder %s145, %s146
      %p160 = scmp.eq.s32.totalorder %s19, 1
      %p161 = por %p159, %p160
      %p163 = scmp.ne.s32.totalorder %s146, %s162
      %p164 = scmp.eq.s32.totalorder %s19, 0
      %p165 = por %p163, %p164
      %p166 = scmp.le.s32.totalorder 1, %s13
      %p167 = scmp.lt.s32.totalorder %s13, 3
      %p168 = pnand %p166, %p167
      %p169 = pneg %p168
      // Predicated region
      $region9: #{contextual_conv1d.1} parent=5 // pred_check
        _
      $region10: #{contextual_conv1d.1} parent=5 // pred_check_branch
        %171 = sbr.rel (%p168) target = $region12
      $region11: #{contextual_conv1d.1} parent=5 // pred_region
        %s172 = ssub.s32 %s13, 1
        // Predicated region
        $region13: #{contextual_conv1d.1} parent=11 // pred_check
          %p173 = pneg %p104
        $region14: #{contextual_conv1d.1} parent=11 // pred_check_branch
          %175 = sbr.rel (%p173) target = $region16
        $region15: #{contextual_conv1d.1} parent=11 // pred_region
          _
        $region16: #{contextual_conv1d.1} parent=11 // pred_fallthru
          _
      $region12: #{contextual_conv1d.1} parent=5 // pred_fallthru
        _
      %p176 = scmp.lt.s32.totalorder %s13, 2
      // Predicated region
      $region17: #{contextual_conv1d.1} parent=5 // pred_check
        %p177 = pneg %p176
      $region18: #{contextual_conv1d.1} parent=5 // pred_check_branch
        %179 = sbr.rel (%p177) target = $region20
      $region19: #{contextual_conv1d.1} parent=5 // pred_region
        // Predicated region
        $region21: #{contextual_conv1d.1} parent=19 // pred_check
          %p180 = pneg %p47
        $region22: #{contextual_conv1d.1} parent=19 // pred_check_branch
          %182 = sbr.rel (%p180) target = $region24
        $region23: #{contextual_conv1d.1} parent=19 // pred_region
          %p183 = scmp.lt.s32.totalorder %s20, 1
          %s184 = scalar_select %p183, %s20, 1
          %p185 = scmp.lt.s32.totalorder %s21, 1
          %s186 = scalar_select %p185, %s21, 1
          %s187 = smul.addr %s184, 2
          %s188 = sadd.s32 %s186, %s187
          %s189 = smul.addr %s188, 8
          %s190 = scalar_lea.vmem %s0, %s189
        $region24: #{contextual_conv1d.1} parent=19 // pred_fallthru
          _
        // Predicated region
        $region25: #{contextual_conv1d.1} parent=19 // pred_check
          %p191 = pneg %p77
        $region26: #{contextual_conv1d.1} parent=19 // pred_check_branch
          %193 = sbr.rel (%p191) target = $region28
        $region27: #{contextual_conv1d.1} parent=19 // pred_region
          %s194 = sadd.s32 %s21, 1
          %p195 = scmp.lt.s32.totalorder %s20, 1
          %s196 = scalar_select %p195, %s20, 1
          %p197 = scmp.lt.s32.totalorder %s194, 1
          %s198 = scalar_select %p197, %s194, 1
          %s199 = smul.addr %s196, 2
          %s200 = sadd.s32 %s198, %s199
          %s201 = smul.addr %s200, 8
          %s202 = scalar_lea.vmem %s1, %s201
          %s203 = sadd.s32 %s21, 1
        $region28: #{contextual_conv1d.1} parent=19 // pred_fallthru
          _
        // Predicated region
        $region29: #{contextual_conv1d.1} parent=19 // pred_check
          %p204 = pneg %p124
        $region30: #{contextual_conv1d.1} parent=19 // pred_check_branch
          %206 = sbr.rel (%p204) target = $region32
        $region31: #{contextual_conv1d.1} parent=19 // pred_region
          %p207 = scmp.lt.s32.totalorder %s20, 1
          %s208 = scalar_select %p207, %s20, 1
          %s209 = smul.addr %s208, 8
          %s210 = scalar_lea.vmem %s3, %s209
        $region32: #{contextual_conv1d.1} parent=19 // pred_fallthru
          _
      $region20: #{contextual_conv1d.1} parent=5 // pred_fallthru
        _
      %p211 = scmp.le.s32.totalorder 1, %s13
      %p212 = scmp.lt.s32.totalorder %s13, 3
      %p213 = pnand %p211, %p212
      %p214 = pneg %p213
      // Predicated region
      $region33: #{contextual_conv1d.1} parent=5 // pred_check
        _
      $region34: #{contextual_conv1d.1} parent=5 // pred_check_branch
        %216 = sbr.rel (%p213) target = $region36
      $region35: #{contextual_conv1d.1} parent=5 // pred_region
        %s217 = ssub.s32 %s13, 1
        %p218 = scmp.lt.s32.totalorder %s22, 1
        %s219 = scalar_select %p218, %s22, 1
        %p220 = scmp.lt.s32.totalorder %s23, 1
        %s221 = scalar_select %p220, %s23, 1
        %s222 = smul.addr %s219, 2
        %s223 = sadd.s32 %s221, %s222
        %s224 = smul.addr %s223, 8
        %s225 = scalar_lea.vmem %s0, %s224
        %p226 = pneg %p53
        %p227 = pneg %p50
        %s228 = sadd.s32 %s23, 1
        %p229 = scmp.lt.s32.totalorder %s22, 1
        %s230 = scalar_select %p229, %s22, 1
        %p231 = scmp.lt.s32.totalorder %s228, 1
        %s232 = scalar_select %p231, %s228, 1
        %s233 = smul.addr %s230, 2
        %s234 = sadd.s32 %s232, %s233
        %s235 = smul.addr %s234, 8
        %s236 = scalar_lea.vmem %s1, %s235
        %p237 = pneg %p83
        %p238 = pneg %p80
        %p239 = pneg %p104
        %p240 = pneg %p101
        %p241 = scmp.lt.s32.totalorder %s22, 1
        %s242 = scalar_select %p241, %s22, 1
        %s243 = smul.addr %s242, 8
        %s244 = scalar_lea.vmem %s3, %s243
        %p245 = pneg %p130
        %p246 = pneg %p127
        %p247 = pneg %p158
        %p248 = pneg %p155
        %s249 = sand.u32 %s145, 1
        %s250 = scalar_lea.sflag [#allocation3], %s249
        %s251 = sand.u32 %s145, 1
        %s252 = smul.addr %s251, 8
        %s253 = scalar_lea.vmem [#allocation2], %s252
        %p254 = scmp.lt.s32.totalorder %s22, 1
        %s255 = scalar_select %p254, %s22, 1
        %p256 = scmp.lt.s32.totalorder %s23, 1
        %s257 = scalar_select %p256, %s23, 1
        %s258 = smul.addr %s255, 2
        %s259 = sadd.s32 %s257, %s258
        %s260 = smul.addr %s259, 8
        %s261 = scalar_lea.vmem %s0, %s260
        %s262 = sadd.s32 %s23, 1
        %p263 = scmp.lt.s32.totalorder %s22, 1
        %s264 = scalar_select %p263, %s22, 1
        %p265 = scmp.lt.s32.totalorder %s262, 1
        %s266 = scalar_select %p265, %s262, 1
        %s267 = smul.addr %s264, 2
        %s268 = sadd.s32 %s266, %s267
        %s269 = smul.addr %s268, 8
        %s270 = scalar_lea.vmem %s1, %s269
        %s271 = sadd.s32 %s23, 1
        %p272 = scmp.lt.s32.totalorder %s22, 1
        %s273 = scalar_select %p272, %s22, 1
        %s274 = smul.addr %s273, 8
        %s275 = scalar_lea.vmem %s3, %s274
        %v276 = vld [vmem:[%s261] sm:$0xff]
        %v277 = vld [vmem:[%s270] sm:$0xff]
        %280 = vrot.lane.b32.xlu0 %v276, 127
        %v281 = vpop.permute.xlu0 %280
        %282 = vrot.lane.b32.xlu0 %v277, 127
        %v283 = vpop.permute.xlu0 %282
        %vm284 = vcmask 1039360
        %v285 = vsel %vm284, %v281, %v283
        %287 = vrot.lane.b32.xlu0 %v276, 126
        %v288 = vpop.permute.xlu0 %287
        %289 = vrot.lane.b32.xlu0 %v277, 126
        %v290 = vpop.permute.xlu0 %289
        %vm291 = vcmask 1031168
        %v292 = vsel %vm291, %v288, %v290
        %v294 = vld [vmem:[%s2] sm:$0xff]
        %v295 = vld [vmem:[%s275] sm:$0xff]
        %297 = vset.pattern.permute.xlu0 0
        %298 = vperm.xlu0 %297, %v295
        %v299 = vpop.permute.xlu0 %298
        %vm301 = vcmask 195584
        %v303 = vsel %vm301, %v294, 0
        %305 = vmatprep.subr.mxu0 0.0
        %306 = vmatpush1.msra.mxu0 %v276
        %307 = vmatprep.subr.mxu0 0.0
        %308 = vmatpush1.msra.mxu0 %v285
        %309 = vmatprep.subr.mxu0 0.0
        %310 = vmatpush1.msra.mxu0 %v292
        %311 = vmatprep.subr.mxu0 0.0
        %312 = vmatpush1.msra.mxu0 0.0
        %313 = vmatprep.subr.mxu0 0.0
        %314 = vmatpush1.msra.mxu0 0.0
        %315 = vmatprep.subr.mxu0 0.0
        %316 = vmatpush1.msra.mxu0 0.0
        %317 = vmatprep.subr.mxu0 0.0
        %318 = vmatpush1.msra.mxu0 0.0
        %319 = vmatprep.subr.mxu0 0.0
        %320 = vmatpush1.msra.mxu0 0.0
        %321 = vmatprep.subr.mxu0 0.0
        %322 = vmatpush1.msra.mxu0 0.0
        %323 = vmatprep.subr.mxu0 0.0
        %324 = vmatpush1.msra.mxu0 0.0
        %325 = vmatprep.subr.mxu0 0.0
        %326 = vmatpush1.msra.mxu0 0.0
        %327 = vmatprep.subr.mxu0 0.0
        %328 = vmatpush1.msra.mxu0 0.0
        %329 = vmatprep.subr.mxu0 0.0
        %330 = vmatpush1.msra.mxu0 0.0
        %331 = vmatprep.subr.mxu0 0.0
        %332 = vmatpush1.msra.mxu0 0.0
        %333 = vmatprep.subr.mxu0 0.0
        %334 = vmatpush1.msra.mxu0 0.0
        %335 = vmatprep.subr.mxu0 0.0
        %336 = vmatpush1.msra.mxu0 0.0
        %337 = vmatprep.subr.mxu0 0.0
        %338 = vmatpush1.msra.mxu0 0.0
        %339 = vmatprep.subr.mxu0 0.0
        %340 = vmatpush1.msra.mxu0 0.0
        %341 = vmatprep.subr.mxu0 0.0
        %342 = vmatpush1.msra.mxu0 0.0
        %343 = vmatprep.subr.mxu0 0.0
        %344 = vmatpush1.msra.mxu0 0.0
        %345 = vmatprep.subr.mxu0 0.0
        %346 = vmatpush1.msra.mxu0 0.0
        %347 = vmatprep.subr.mxu0 0.0
        %348 = vmatpush1.msra.mxu0 0.0
        %349 = vmatprep.subr.mxu0 0.0
        %350 = vmatpush1.msra.mxu0 0.0
        %351 = vmatprep.subr.mxu0 0.0
        %352 = vmatpush1.msra.mxu0 0.0
        %353 = vmatprep.subr.mxu0 0.0
        %354 = vmatpush1.msra.mxu0 0.0
        %355 = vmatprep.subr.mxu0 0.0
        %356 = vmatpush1.msra.mxu0 0.0
        %357 = vmatprep.subr.mxu0 0.0
        %358 = vmatpush1.msra.mxu0 0.0
        %359 = vmatprep.subr.mxu0 0.0
        %360 = vmatpush1.msra.mxu0 0.0
        %361 = vmatprep.subr.mxu0 0.0
        %362 = vmatpush1.msra.mxu0 0.0
        %363 = vmatprep.subr.mxu0 0.0
        %364 = vmatpush1.msra.mxu0 0.0
        %365 = vmatprep.subr.mxu0 0.0
        %366 = vmatpush1.msra.mxu0 0.0
        %367 = vmatprep.subr.mxu0 0.0
        %368 = vmatpush1.msra.mxu0 0.0
        %369 = vmatprep.mubr.f32.mxu0 0.0
        %370 = vmatmul.mubr.f32.gmra.mrb[0].mxu0 %v303
        %v371 = vpop.f32.mrb[0].mxu0
        %v372 = vadd.f32 %v299, %v371
        %v373 = vpop.f32.mrb[0].mxu0
        %374 = vdwg.mxu0
        %375 = vst [vmem:[%s253] sm:$0xff] %v372
        %s376 = sand.u32 %s145, 1
        %s377 = scalar_lea.sflag [#allocation3], %s376
        %s378 = sand.u32 %s145, 1
        %s379 = smul.addr %s378, 8
        %s380 = scalar_lea.vmem [#allocation2], %s379
        // Predicated region
        $region37: #{contextual_conv1d.1} parent=35 // pred_check
          %p381 = pneg %p155
        $region38: #{contextual_conv1d.1} parent=35 // pred_check_branch
          %383 = sbr.rel (%p381) target = $region40
        $region39: #{contextual_conv1d.1} parent=35 // pred_region
          %s385 = ssub.s32 128, 128
          %386 = vsyncadd %s377, %s385
          %s387 = sadd.s32 %s23, %s22
          %s388 = smul.addr %s387, 128
          %s389 = scalar_lea.hbm %s4, %s388
          %s391 = sshll.u32 %s380, 4
          %s392 = int_to_ptr.vmem [resolvable:$true] %s391
          %394 = dma.vmem_to_hbm [thread:$0]  %s392, 128, %s389, %s377
        $region40: #{contextual_conv1d.1} parent=35 // pred_fallthru
          _
      $region36: #{contextual_conv1d.1} parent=5 // pred_fallthru
        _
      %p395 = scmp.le.s32.totalorder 2, %s13
      // Predicated region
      $region41: #{contextual_conv1d.1} parent=5 // pred_check
        %p396 = pneg %p395
      $region42: #{contextual_conv1d.1} parent=5 // pred_check_branch
        %398 = sbr.rel (%p396) target = $region44
      $region43: #{contextual_conv1d.1} parent=5 // pred_region
        %s399 = ssub.s32 %s13, 2
        // Predicated region
        $region45: #{contextual_conv1d.1} parent=43 // pred_check
          %p400 = pneg %p161
        $region46: #{contextual_conv1d.1} parent=43 // pred_check_branch
          %402 = sbr.rel (%p400) target = $region48
        $region47: #{contextual_conv1d.1} parent=43 // pred_region
          %s403 = sand.u32 %s146, 1
          %s404 = scalar_lea.sflag [#allocation3], %s403
          %s405 = sand.u32 %s146, 1
          %s406 = smul.addr %s405, 8
          %s407 = scalar_lea.vmem [#allocation2], %s406
          %408 = dma.done %s404, 128
        $region48: #{contextual_conv1d.1} parent=43 // pred_fallthru
          _
      $region44: #{contextual_conv1d.1} parent=5 // pred_fallthru
        _
    $region6: #{contextual_conv1d.1} parent=1 // loop_footer
      %s17 = sadd.s32 1, %s13
    $region7: #{contextual_conv1d.1} parent=1 // loop_footer_branch
      %12 = sbr.rel target = $region3
    $region8: #{contextual_conv1d.1} parent=1 // loop_exit
      _
    %409 = vsyncpa [#allocation3], 1
    %s410 = scalar_lea.sflag [#allocation3], 1
    %411 = vsyncpa %s410, 1

</llo_original>
